<compile_context>
chip_gen: v7x
topology: tpu7x:2x2x1
jax: 0.10.0
libtpu: 0.0.40
codegen_flags: <defaults>
</compile_context>

<pallas_src>
import jax
import jax.numpy as jnp
from jax.experimental import pallas as pl
from jax.experimental.pallas import tpu as pltpu


# ---------------------------------------------------------------------------
# Kernels
# ---------------------------------------------------------------------------

def _channel_attn_kernel(x_ref, o_ref):
    """Single-pass: x_ref/o_ref are (TB, C, HW) blocks in the native dtype."""
    x = x_ref[...]                                              # native dtype

    # Per-channel spatial sums, f32 accumulation: (TB, C, 1).
    s = jnp.sum(x, axis=-1, keepdims=True, dtype=jnp.float32)
    # Per-batch-row total over channels: (TB, 1, 1).
    t = jnp.sum(s, axis=1, keepdims=True)

    # scale = S/T + 1  ==  mean_c / sum_c(mean_c) + 1   (the /HW cancels).
    # Exact divide; scale stays in f32, only the product is cast.
    scale = s / t + 1.0                                         # (TB, C, 1) f32
    o_ref[...] = (x * scale).astype(o_ref.dtype)


def _make_sum_kernel(hw, thw):
    """Two-pass, pass 1: accumulate per-channel sums over lane-dense HW tiles."""
    needs_mask = (hw % thw) != 0

    def kernel(x_ref, s_ref):
        @pl.when(pl.program_id(1) == 0)
        def _():
            s_ref[...] = jnp.zeros_like(s_ref)

        x = x_ref[...]                                          # (1, C, THW)
        if needs_mask:
            # Tail HW tile may contain out-of-bounds garbage columns.
            j = pl.program_id(1)
            col = jax.lax.broadcasted_iota(jnp.int32, x.shape, x.ndim - 1)
            x = jnp.where(j * thw + col < hw, x, jnp.zeros_like(x))
        s_ref[...] += jnp.sum(x, axis=-1, keepdims=True, dtype=jnp.float32)

    return kernel


def _scale_kernel(x_ref, scale_ref, o_ref):
    """Two-pass, pass 2: o = x * (S/T + 1), scale broadcast over HW."""
    o_ref[...] = (x_ref[...] * scale_ref[...]).astype(o_ref.dtype)


# ---------------------------------------------------------------------------
# Sizing helpers
# ---------------------------------------------------------------------------

def _round_up(n, m):
    return (n + m - 1) // m * m


def _vmem_capacity_bytes():
    """Physical VMEM of the local chip, with a conservative fallback."""
    try:
        info = pltpu.get_tpu_info()
        cap = getattr(info, "vmem_capacity_bytes", None)
        if cap:
            return int(cap)
    except Exception:
        pass
    return 64 * 1024 * 1024  # smallest across v5e/v6e/v7x (v7x per-TC)


def _vmem_limit_bytes(block_bytes, vmem_cap):
    """2 buffers x (in + out) x padded block + slack, capped below physical."""
    want = 4 * block_bytes + 4 * 1024 * 1024
    want = max(want, 32 * 1024 * 1024)
    cap = max(32 * 1024 * 1024, (vmem_cap * 3) // 4)
    return int(min(want, cap))


def _pick_batch_tile(b, padded_row_bytes, budget_bytes, target_steps=4):
    """Largest batch tile under the VMEM budget, keeping >= target_steps grid
    steps when B allows it (megacore sharding + DMA/compute pipelining)."""
    tb = max(1, budget_bytes // max(padded_row_bytes, 1))
    tb = min(tb, max(1, b // target_steps))
    return max(1, min(tb, b))


# ---------------------------------------------------------------------------
# Wrapper
# ---------------------------------------------------------------------------

def _channel_attn_two_pass(x_flat, b, c, hw, itemsize, padded_c, budget, vmem_cap):
    # Lane-dense HW tile.
    if hw <= 128:
        thw = hw
    else:
        thw = (budget // (padded_c * itemsize)) // 128 * 128
        thw = max(128, min(thw, (hw // 128) * 128))
    n_hw = pl.cdiv(hw, thw)
    block_bytes = padded_c * _round_up(thw, 128) * itemsize
    vmem_limit = _vmem_limit_bytes(block_bytes, vmem_cap)

    # Pass 1: per-channel sums S (f32), accumulated in a resident output block.
    s = pl.pallas_call(
        _make_sum_kernel(hw, thw),
        out_shape=jax.ShapeDtypeStruct((b, c, 1), jnp.float32),
        grid_spec=pltpu.PrefetchScalarGridSpec(
            num_scalar_prefetch=0,
            grid=(b, n_hw),
            in_specs=[pl.BlockSpec((1, c, thw), lambda i, j: (i, 0, j))],
            out_specs=pl.BlockSpec((1, c, 1), lambda i, j: (i, 0, 0)),
        ),
        compiler_params=pltpu.CompilerParams(
            dimension_semantics=("parallel", "arbitrary"),
            vmem_limit_bytes=vmem_limit,
        ),
    )(x_flat)

    # Tiny per-batch normalization in plain XLA (B*C values).
    t = jnp.sum(s, axis=1, keepdims=True)
    scale = s / t + 1.0                                          # (B, C, 1) f32

    # Pass 2: re-stream HW tiles applying the fused scale.
    out = pl.pallas_call(
        _scale_kernel,
        out_shape=jax.ShapeDtypeStruct((b, c, hw), x_flat.dtype),
        grid_spec=pltpu.PrefetchScalarGridSpec(
            num_scalar_prefetch=0,
            grid=(b, n_hw),
            in_specs=[pl.BlockSpec((1, c, thw), lambda i, j: (i, 0, j)),
                      pl.BlockSpec((1, c, 1), lambda i, j: (i, 0, 0))],
            out_specs=pl.BlockSpec((1, c, thw), lambda i, j: (i, 0, j)),
        ),
        compiler_params=pltpu.CompilerParams(
            dimension_semantics=("parallel", "parallel"),
            vmem_limit_bytes=vmem_limit,
        ),
    )(x_flat, scale)
    return out


def channel_attn(x, *, block_budget_bytes=None):
    """x: (B, C, H, W) array. Returns same shape/dtype."""
    b, c, h, w = x.shape
    hw = h * w
    x_flat = x.reshape(b, c, hw)

    itemsize = x.dtype.itemsize
    sublane_tile = 8 * max(1, 4 // itemsize)        # 8 f32 / 16 bf16 / 32 int8
    padded_c = _round_up(c, sublane_tile)
    padded_hw = _round_up(hw, 128)
    padded_row_bytes = padded_c * padded_hw * itemsize

    vmem_cap = _vmem_capacity_bytes()
    # ~8 MiB blocks: on v7x (3.2 TB/s) this keeps the 0.35 us per-step overhead
    # to a few %, and 4x8 MiB of buffering fits every generation's VMEM.
    budget = block_budget_bytes or min(8 * 1024 * 1024,
                                       max(1 << 20, vmem_cap // 8))

    # TODO(synk): for HW not a multiple of 128 with C a multiple of 128
    # (e.g. 7x7/14x14 late-stage maps), a (B, HW, C) lane-dense-C layout would
    # avoid masked partial vld/vst; needs an in-kernel transpose to pay off.

    if padded_row_bytes > budget:
        out_flat = _channel_attn_two_pass(
            x_flat, b, c, hw, itemsize, padded_c, budget, vmem_cap)
    else:
        tb = _pick_batch_tile(b, padded_row_bytes, budget)
        block_bytes = tb * padded_row_bytes
        vmem_limit = _vmem_limit_bytes(block_bytes, vmem_cap)
        out_flat = pl.pallas_call(
            _channel_attn_kernel,
            out_shape=jax.ShapeDtypeStruct((b, c, hw), x.dtype),
            grid_spec=pltpu.PrefetchScalarGridSpec(
                num_scalar_prefetch=0,
                grid=(pl.cdiv(b, tb),),
                in_specs=[pl.BlockSpec((tb, c, hw), lambda i: (i, 0, 0))],
                out_specs=pl.BlockSpec((tb, c, hw), lambda i: (i, 0, 0)),
            ),
            compiler_params=pltpu.CompilerParams(
                dimension_semantics=("parallel",),
                vmem_limit_bytes=vmem_limit,
            ),
        )(x_flat)

    return out_flat.reshape(b, c, h, w)


# ---------------------------------------------------------------------------
# Reference + test
# ---------------------------------------------------------------------------

def _reference(x):
    """Pure-JAX reference mirroring the PyTorch forward exactly."""
    b, c, h, w = x.shape
    z = x.reshape(b, c, h * w).mean(-1)               # (B, C)
    z = z / jnp.sum(z, axis=1, keepdims=True)         # per-batch normalize
    z = z.reshape(b, c, 1, 1)
    return x * z + x


def _check(out, ref, name):
    assert out.shape == ref.shape, f"{name}: shape mismatch"
    assert jnp.allclose(out, ref, atol=1e-5, rtol=1e-5), f"{name}: mismatch vs reference"


if __name__ == "__main__":
    key = jax.random.PRNGKey(0)
    k1, k2, k3 = jax.random.split(key, 3)

    # Non-negative, feature-map-like inputs; the module divides by the summed
    # channel means, which (as in the PyTorch original) is ill-defined near 0.
    x1 = jax.random.uniform(k1, (2, 4, 16, 16), dtype=jnp.float32)
    x2 = jax.random.uniform(k2, (3, 4, 10, 10), dtype=jnp.float32)
    x3 = jax.random.uniform(k3, (2, 8, 12, 12), dtype=jnp.float32)

    # 1) Default single-pass path.
    out1 = jax.block_until_ready(channel_attn(x1))
    _check(out1, _reference(x1), "single-pass")

    # 2) Force the two-pass (HW-tiled accumulate + scale) path.
    out2 = jax.block_until_ready(channel_attn(x1, block_budget_bytes=4096))
    _check(out2, _reference(x1), "two-pass")

    # 3) Non-divisor batch grid (padded tail block) + sub-128 HW last dim.
    out3 = jax.block_until_ready(channel_attn(x2, block_budget_bytes=8192))
    _check(out3, _reference(x2), "padded batch tail")

    # 4) Two-pass with a masked tail HW tile (hw=144, thw=128).
    out4 = jax.block_until_ready(channel_attn(x3, block_budget_bytes=4096))
    _check(out4, _reference(x3), "two-pass masked tail")

    print("KERNEL_OK")
</pallas_src>

<mosaic_0001>
module attributes {stable_mosaic.version = 11 : i64} {
  func.func @_channel_attn_kernel(%arg0: i32, %arg1: memref<1x4x256xf32, #tpu.memory_space<vmem>>, %arg2: memref<1x4x256xf32, #tpu.memory_space<vmem>>) attributes {dimension_semantics = [#tpu.dimension_semantics<parallel>], iteration_bounds = array<i64: 2>, scalar_prefetch = 0 : i64, scratch_operands = 0 : i64, tpu.core_type = #tpu.core_type<tc>, window_params = [{transform_indices = @transform_0, window_bounds = array<i64: 1, 4, 256>}, {transform_indices = @transform_1, window_bounds = array<i64: 1, 4, 256>}]} {
    %c0 = arith.constant 0 : index
    %c0_0 = arith.constant 0 : index
    %c0_1 = arith.constant 0 : index
    %0 = vector.load %arg1[%c0, %c0_0, %c0_1] : memref<1x4x256xf32, #tpu.memory_space<vmem>>, vector<1x4x256xf32>
    %cst = arith.constant dense<0.000000e+00> : vector<1x4xf32>
    %1 = vector.multi_reduction <add>, %0, %cst [2] : vector<1x4x256xf32> to vector<1x4xf32>
    %2 = vector.shape_cast %1 : vector<1x4xf32> to vector<1x4x1xf32>
    %cst_2 = arith.constant dense<0.000000e+00> : vector<1x1xf32>
    %3 = vector.multi_reduction <add>, %2, %cst_2 [1] : vector<1x4x1xf32> to vector<1x1xf32>
    %4 = vector.shape_cast %3 : vector<1x1xf32> to vector<1x1x1xf32>
    %5 = vector.broadcast %4 : vector<1x1x1xf32> to vector<1x4x1xf32>
    %6 = arith.divf %2, %5 : vector<1x4x1xf32>
    %cst_3 = arith.constant 1.000000e+00 : f32
    %7 = vector.broadcast %cst_3 : f32 to vector<1x4x1xf32>
    %8 = arith.addf %6, %7 : vector<1x4x1xf32>
    %9 = vector.broadcast %8 : vector<1x4x1xf32> to vector<1x4x256xf32>
    %10 = arith.mulf %0, %9 : vector<1x4x256xf32>
    %c0_4 = arith.constant 0 : index
    %c0_5 = arith.constant 0 : index
    %c0_6 = arith.constant 0 : index
    %11 = vector.load %arg2[%c0_4, %c0_5, %c0_6] : memref<1x4x256xf32, #tpu.memory_space<vmem>>, vector<1x4x256xf32>
    tpu.vector_store %arg2[%c0_4, %c0_5, %c0_6], %10 {strides = array<i32>} : memref<1x4x256xf32, #tpu.memory_space<vmem>>, vector<1x4x256xf32>,
    return
  }
  func.func @transform_0(%arg0: i32) -> (i32, i32, i32) {
    %c0_i32 = arith.constant 0 : i32
    %c0_i32_0 = arith.constant 0 : i32
    %c0_i32_1 = arith.constant 0 : i32
    return %arg0, %c0_i32, %c0_i32_0 : i32, i32, i32
  }
  func.func @transform_1(%arg0: i32) -> (i32, i32, i32) {
    %c0_i32 = arith.constant 0 : i32
    %c0_i32_0 = arith.constant 0 : i32
    %c0_i32_1 = arith.constant 0 : i32
    return %arg0, %c0_i32, %c0_i32_0 : i32, i32, i32
  }
}

</mosaic_0001>

<llo_original>
// kernel: tpu_custom_call.1
$region0: #{tpu_custom_call.1}
  #allocation0 [shape = 'u32[]', space=smem, size = 0x4, offset = 0x4, fixed_abs, tag = 'smem constant byte address 0x4 - core index']
  #allocation1 [shape = 'u32[144,128]{1,0:T(1,128)}', space=vmem, size = 0x12000, scoped, tag = 'internal scratch']
  %s0 = inlined_call_operand.hbm [shape: f32[2,4,256], index: 0, kind: input, shape index: {}]
  %s1 = inlined_call_operand.hbm [shape: f32[2,4,256], index: 1, kind: output, shape index: {}]
  %s2 = sld [smem:[#allocation0]]
  $region41: #{tpu_custom_call.1} parent=0
    _
  %s4 = ssub.s32 1, %s2
  %s5 = scalar_select 0, %s4, %s2
  $region1: #{tpu_custom_call.1} parent=0
    #allocation2 [shape = 'u8[8192]{0}', space=vmem, size = 0x2000, scoped, tag = 'input window, operand 0']
    #allocation3 [shape = 's32[2]{0}', space=sflag, size = 0x8, scoped, tag = 'scoped memory for tpu_custom_call.1']
    #allocation4 [shape = 's32[2]{0}', space=sflag, size = 0x8, scoped, tag = 'scoped memory for tpu_custom_call.1']
    #allocation5 [shape = 'u8[8192]{0}', space=vmem, size = 0x2000, scoped, tag = 'output window, operand 0']
    %6 = vsyncpa [#allocation3], 0
    %s7 = scalar_lea.sflag [#allocation3], 1
    %8 = vsyncpa %s7, 0
    %9 = vsyncpa [#allocation4], 0
    %s10 = scalar_lea.sflag [#allocation4], 1
    %11 = vsyncpa %s10, 0
    loop: start=0, step=1, limit=4
    $region2: #{tpu_custom_call.1} parent=1 // loop_pre_header
      _
    $region3: #{tpu_custom_call.1} parent=1 // loop_header
      %s13 = sphi 0, %s17
      %p14 = scmp.ge.s32.totalorder %s13, 4
      %s23 = sphi 0, %s25
      %s26 = sphi 0, %s23
      %s27 = sphi 0, %s26
      %s43 = sphi 0, %s27
      %s49 = sphi 0, %s51
      %s52 = sphi 0, %s49
      %s53 = sphi 0, %s52
      %s69 = sphi 0, %s53
    $region4: #{tpu_custom_call.1} parent=1 // loop_header_branch
      %16 = sbr.rel (%p14) target = $region8
    $region5: #{tpu_custom_call.1} parent=1 // loop_body
      %s18 = ssub.s32 %s13, 1
      %s19 = ssub.s32 %s13, 2
      %s20 = sadd.s32 %s13, 1
      %s21 = ssub.s32 %s13, %s20
      %p22 = scmp.eq.s32.totalorder %s21, 0
      %s24 = sadd.s32 %s23, 1
      %s25 = scalar_select %p22, %s23, %s24
      %p28 = pneg %p22
      %p29 = scmp.eq.s32.totalorder %s13, 1
      %p30 = por %p28, %p29
      %p31 = scmp.ne.s32.totalorder %s23, %s26
      %p32 = scmp.eq.s32.totalorder %s13, 0
      %p33 = por %p31, %p32
      %p34 = scmp.ne.s32.totalorder %s23, %s26
      %p35 = scmp.eq.s32.totalorder %s18, 1
      %p36 = por %p34, %p35
      %p37 = scmp.ne.s32.totalorder %s26, %s27
      %p38 = scmp.eq.s32.totalorder %s18, 0
      %p39 = por %p37, %p38
      %p40 = scmp.ne.s32.totalorder %s26, %s27
      %p41 = scmp.eq.s32.totalorder %s19, 1
      %p42 = por %p40, %p41
      %p44 = scmp.ne.s32.totalorder %s27, %s43
      %p45 = scmp.eq.s32.totalorder %s19, 0
      %p46 = por %p44, %p45
      %s47 = ssub.s32 %s13, %s20
      %p48 = scmp.eq.s32.totalorder %s47, 0
      %s50 = sadd.s32 %s49, 1
      %s51 = scalar_select %p48, %s49, %s50
      %p54 = pneg %p48
      %p55 = scmp.eq.s32.totalorder %s13, 1
      %p56 = por %p54, %p55
      %p57 = scmp.ne.s32.totalorder %s49, %s52
      %p58 = scmp.eq.s32.totalorder %s13, 0
      %p59 = por %p57, %p58
      %p60 = scmp.ne.s32.totalorder %s49, %s52
      %p61 = scmp.eq.s32.totalorder %s18, 1
      %p62 = por %p60, %p61
      %p63 = scmp.ne.s32.totalorder %s52, %s53
      %p64 = scmp.eq.s32.totalorder %s18, 0
      %p65 = por %p63, %p64
      %p66 = scmp.ne.s32.totalorder %s52, %s53
      %p67 = scmp.eq.s32.totalorder %s19, 1
      %p68 = por %p66, %p67
      %p70 = scmp.ne.s32.totalorder %s53, %s69
      %p71 = scmp.eq.s32.totalorder %s19, 0
      %p72 = por %p70, %p71
      %p73 = scmp.le.s32.totalorder 1, %s13
      %p74 = scmp.lt.s32.totalorder %s13, 3
      %p75 = pnand %p73, %p74
      %p76 = pneg %p75
      // Predicated region
      $region9: #{tpu_custom_call.1} parent=5 // pred_check
        _
      $region10: #{tpu_custom_call.1} parent=5 // pred_check_branch
        %78 = sbr.rel (%p75) target = $region12
      $region11: #{tpu_custom_call.1} parent=5 // pred_region
        %s79 = ssub.s32 %s13, 1
      $region12: #{tpu_custom_call.1} parent=5 // pred_fallthru
        _
      %p80 = scmp.lt.s32.totalorder %s13, 2
      // Predicated region
      $region13: #{tpu_custom_call.1} parent=5 // pred_check
        %p81 = pneg %p80
      $region14: #{tpu_custom_call.1} parent=5 // pred_check_branch
        %83 = sbr.rel (%p81) target = $region16
      $region15: #{tpu_custom_call.1} parent=5 // pred_region
        // Predicated region
        $region17: #{tpu_custom_call.1} parent=15 // pred_check
          %p84 = pneg %p33
        $region18: #{tpu_custom_call.1} parent=15 // pred_check_branch
          %86 = sbr.rel (%p84) target = $region20
        $region19: #{tpu_custom_call.1} parent=15 // pred_region
          %s87 = sand.u32 %s23, 1
          %s88 = scalar_lea.sflag [#allocation3], %s87
          %s89 = sand.u32 %s23, 1
          %s90 = smul.addr %s89, 8
          %s91 = scalar_lea.vmem [#allocation2], %s90
          %s93 = ssub.s32 128, 128
          %94 = vsyncadd %s88, %s93
          %s95 = smul.addr %s13, 2
          %s96 = smul.addr %s95, 64
          %s97 = scalar_lea.hbm %s0, %s96
          %s99 = sshll.u32 %s91, 4
          %s100 = int_to_ptr.vmem [resolvable:$true] %s99
          %102 = dma.hbm_to_vmem [thread:$0]  %s97, 128, %s100, %s88
        $region20: #{tpu_custom_call.1} parent=15 // pred_fallthru
          _
      $region16: #{tpu_custom_call.1} parent=5 // pred_fallthru
        _
      %p103 = scmp.le.s32.totalorder 1, %s13
      %p104 = scmp.lt.s32.totalorder %s13, 3
      %p105 = pnand %p103, %p104
      %p106 = pneg %p105
      // Predicated region
      $region21: #{tpu_custom_call.1} parent=5 // pred_check
        _
      $region22: #{tpu_custom_call.1} parent=5 // pred_check_branch
        %108 = sbr.rel (%p105) target = $region24
      $region23: #{tpu_custom_call.1} parent=5 // pred_region
        %s109 = ssub.s32 %s13, 1
        %s110 = sand.u32 %s26, 1
        %s111 = scalar_lea.sflag [#allocation3], %s110
        %s112 = sand.u32 %s26, 1
        %s113 = smul.addr %s112, 8
        %s114 = scalar_lea.vmem [#allocation2], %s113
        // Predicated region
        $region25: #{tpu_custom_call.1} parent=23 // pred_check
          %p115 = pneg %p39
        $region26: #{tpu_custom_call.1} parent=23 // pred_check_branch
          %117 = sbr.rel (%p115) target = $region28
        $region27: #{tpu_custom_call.1} parent=23 // pred_region
          %118 = dma.done %s111, 128
        $region28: #{tpu_custom_call.1} parent=23 // pred_fallthru
          _
        %s119 = sand.u32 %s26, 1
        %s120 = scalar_lea.sflag [#allocation3], %s119
        %s121 = sand.u32 %s26, 1
        %s122 = smul.addr %s121, 8
        %s123 = scalar_lea.vmem [#allocation2], %s122
        %p124 = pneg %p39
        %p125 = pneg %p36
        %p126 = pneg %p65
        %p127 = pneg %p62
        %s128 = sand.u32 %s52, 1
        %s129 = scalar_lea.sflag [#allocation4], %s128
        %s130 = sand.u32 %s52, 1
        %s131 = smul.addr %s130, 8
        %s132 = scalar_lea.vmem [#allocation5], %s131
        %v133 = vld [vmem:[%s114] sm:$0xff]
        %v135 = vcombine.high %v133, %v133
        %vm137 = vcmask 1043456
        %v138 = vsel %vm137, %v133, 0.0
        %v139 = vsel %vm137, %v135, 0.0
        %v140 = vadd.f32 %v138, %v139
        %141 = vadd.xlane.f32.xlu0 %v140
        %v142 = vpop.xlane.xlu0 %141
        %v143 = vsel %vm137, %v142, 0.0
        %v144 = vrot.slane %v143, 4
        %v145 = vadd.f32 %v143, %v144
        %v146 = vrot.slane %v145, 2
        %v147 = vadd.f32 %v145, %v146
        %v148 = vrot.slane %v147, 1
        %v149 = vadd.f32 %v147, %v148
        %v150 = vrcp.pop %v149
        %v151 = vmul.f32 %v142, %v150
        %v152 = vadd.f32 %v151, 1.0
        %v155 = vunpack.c.l.s4 839922192
        %v156 = vunpack.c.0.s8 %v155
        %v157 = vlaneseq
        %v158 = vshrl.u32 %v157, 7
        %v159 = vsub.s32 %v156, %v158
        %v160 = vrot.slane %v152, %v159
        %v162 = vmul.f32 %v133, %v160
        %163 = vst [vmem:[%s132] sm:$0xff] %v162
        %s164 = sand.u32 %s52, 1
        %s165 = scalar_lea.sflag [#allocation4], %s164
        %s166 = sand.u32 %s52, 1
        %s167 = smul.addr %s166, 8
        %s168 = scalar_lea.vmem [#allocation5], %s167
        // Predicated region
        $region29: #{tpu_custom_call.1} parent=23 // pred_check
          %p169 = pneg %p62
        $region30: #{tpu_custom_call.1} parent=23 // pred_check_branch
          %171 = sbr.rel (%p169) target = $region32
        $region31: #{tpu_custom_call.1} parent=23 // pred_region
          %s173 = ssub.s32 128, 128
          %174 = vsyncadd %s165, %s173
          %s175 = smul.addr %s18, 2
          %s176 = smul.addr %s175, 64
          %s177 = scalar_lea.hbm %s1, %s176
          %s179 = sshll.u32 %s168, 4
          %s180 = int_to_ptr.vmem [resolvable:$true] %s179
          %182 = dma.vmem_to_hbm [thread:$0]  %s180, 128, %s177, %s165
        $region32: #{tpu_custom_call.1} parent=23 // pred_fallthru
          _
      $region24: #{tpu_custom_call.1} parent=5 // pred_fallthru
        _
      %p183 = scmp.le.s32.totalorder 2, %s13
      // Predicated region
      $region33: #{tpu_custom_call.1} parent=5 // pred_check
        %p184 = pneg %p183
      $region34: #{tpu_custom_call.1} parent=5 // pred_check_branch
        %186 = sbr.rel (%p184) target = $region36
      $region35: #{tpu_custom_call.1} parent=5 // pred_region
        %s187 = ssub.s32 %s13, 2
        // Predicated region
        $region37: #{tpu_custom_call.1} parent=35 // pred_check
          %p188 = pneg %p68
        $region38: #{tpu_custom_call.1} parent=35 // pred_check_branch
          %190 = sbr.rel (%p188) target = $region40
        $region39: #{tpu_custom_call.1} parent=35 // pred_region
          %s191 = sand.u32 %s53, 1
          %s192 = scalar_lea.sflag [#allocation4], %s191
          %s193 = sand.u32 %s53, 1
          %s194 = smul.addr %s193, 8
          %s195 = scalar_lea.vmem [#allocation5], %s194
          %196 = dma.done %s192, 128
        $region40: #{tpu_custom_call.1} parent=35 // pred_fallthru
          _
      $region36: #{tpu_custom_call.1} parent=5 // pred_fallthru
        _
    $region6: #{tpu_custom_call.1} parent=1 // loop_footer
      %s17 = sadd.s32 1, %s13
    $region7: #{tpu_custom_call.1} parent=1 // loop_footer_branch
      %12 = sbr.rel target = $region3
    $region8: #{tpu_custom_call.1} parent=1 // loop_exit
      _
    %197 = vsyncpa [#allocation3], 1
    %s198 = scalar_lea.sflag [#allocation3], 1
    %199 = vsyncpa %s198, 1
    %200 = vsyncpa [#allocation4], 1
    %s201 = scalar_lea.sflag [#allocation4], 1
    %202 = vsyncpa %s201, 1

</llo_original>
